<compile_context>
chip_gen: v6e
topology: v6e:2x2x1
jax: 0.10.0
libtpu: 0.0.40
codegen_flags: <defaults>
</compile_context>

<pallas_src>
import functools

import numpy as np
import jax
import jax.numpy as jnp
from jax.experimental import pallas as pl
from jax.experimental.pallas import tpu as pltpu


def _border_masks(H, W):
    """masks[k, p] = 1.0 where 3x3 tap k (k = kh*3 + kw) stays inside the image."""
    m = np.ones((9, H, W), np.float32)
    for k in range(9):
        kh, kw = divmod(k, 3)
        dh, dw = kh - 1, kw - 1
        if dh == -1:
            m[k, 0, :] = 0.0
        if dh == +1:
            m[k, H - 1, :] = 0.0
        if dw == -1:
            m[k, :, 0] = 0.0
        if dw == +1:
            m[k, :, W - 1] = 0.0
    return m.reshape(9, H * W)


def _conv3x3_sigmoid_kernel(x_ref, w_ref, b_ref, m_ref, o_ref, col_ref, *, W):
    # x_ref  : [Cin, HW]     f32, one image, channel-major, spatial flattened
    # w_ref  : [Cout, 9*Cin] bf16, columns ordered (kh, kw, cin)
    # b_ref  : [Cout, 1]     f32
    # m_ref  : [9, HW]       f32 border masks (zero-padding equivalence)
    # o_ref  : [Cout, HW]    f32, lane-dense output (CHW, spatial flattened)
    # col_ref: [9*Cin, HW]   bf16 VMEM scratch, K-major im2col operand
    Cin, HW = x_ref.shape
    x = x_ref[...]

    # im2col via lane rolls: output pixel p = i*W + j for tap (dh, dw) needs
    # x at flat index p + dh*W + dw, i.e. roll by -(dh*W + dw) (np.roll
    # convention), then zero the lanes that circularly wrapped across a border.
    for k in range(9):                                   # 9 static taps
        kh, kw = divmod(k, 3)
        dh, dw = kh - 1, kw - 1
        if dh == 0 and dw == 0:
            tap = x                                      # center tap: no shift, no mask
        else:
            shift = (-(dh * W + dw)) % HW
            tap = pltpu.roll(x, shift=shift, axis=1) * m_ref[k:k + 1, :]
        col_ref[k * Cin:(k + 1) * Cin, :] = tap.astype(col_ref.dtype)

    # Single MXU matmul over the fused contraction K = 9*Cin,
    # standard A[M,K] @ B[K,N] with bf16 operands and f32 accumulation.
    acc = jax.lax.dot_general(
        w_ref[...], col_ref[...],
        dimension_numbers=(((1,), (0,)), ((), ())),
        preferred_element_type=jnp.float32)              # [Cout, HW] f32

    # f32 epilogue: bias + sigmoid + unmasked lane-dense stores.
    o_ref[...] = jax.nn.sigmoid(acc + b_ref[...]).astype(o_ref.dtype)


def conv3x3_sigmoid(x_nchw, w_oihw, b):
    """sigmoid(conv2d(x, w, b, 3x3, stride=1, padding=1)); NCHW in, NCHW out."""
    N, Cin, H, W = x_nchw.shape
    Cout = w_oihw.shape[0]
    HW = H * W
    x_flat = x_nchw.reshape(N, Cin, HW)                  # free contiguous reshape
    # OIHW -> [Cout, (kh*3+kw)*Cin + cin], matching the col row ordering.
    w2 = jnp.transpose(w_oihw, (0, 2, 3, 1)).reshape(Cout, 9 * Cin)
    w2 = w2.astype(jnp.bfloat16)                         # bf16 MXU operand
    b2 = b.reshape(Cout, 1).astype(jnp.float32)
    masks = jnp.asarray(_border_masks(H, W))             # compile-time constant

    out_flat = pl.pallas_call(
        functools.partial(_conv3x3_sigmoid_kernel, W=W),
        out_shape=jax.ShapeDtypeStruct((N, Cout, HW), jnp.float32),
        grid_spec=pltpu.PrefetchScalarGridSpec(
            num_scalar_prefetch=0,
            grid=(N,),
            in_specs=[
                pl.BlockSpec((None, Cin, HW), lambda n: (n, 0, 0)),
                pl.BlockSpec((Cout, 9 * Cin), lambda n: (0, 0)),
                pl.BlockSpec((Cout, 1), lambda n: (0, 0)),
                pl.BlockSpec((9, HW), lambda n: (0, 0)),
            ],
            out_specs=pl.BlockSpec((None, Cout, HW), lambda n: (n, 0, 0)),
            scratch_shapes=[pltpu.VMEM((9 * Cin, HW), jnp.bfloat16)],
        ),
        compiler_params=pltpu.CompilerParams(
            dimension_semantics=("parallel",)),
    )(x_flat, w2, b2, masks)
    # Free contiguous reshape: (N, Cout, H*W) -> (N, Cout, H, W) == NCHW.
    return out_flat.reshape(N, Cout, H, W)


def init_conv_params(key, cin, cout, k=3):
    # Deterministic init matching PyTorch Conv2d default bounds U[-1/sqrt(fan_in), +].
    kw_, kb_ = jax.random.split(key)
    fan_in = cin * k * k
    bound = 1.0 / np.sqrt(fan_in)
    w = jax.random.uniform(kw_, (cout, cin, k, k), jnp.float32, -bound, bound)
    b = jax.random.uniform(kb_, (cout,), jnp.float32, -bound, bound)
    return w, b


@jax.jit
def model_forward(x1_nchw, params, key_x2):
    (w1, b1), (w2, b2) = params
    N, _, H, W = x1_nchw.shape
    # v1 = conv1(x1); v2 = sigmoid(v1): mirrors the PyTorch forward, but the
    # result is unused, so jit dead-code-eliminates the whole path (zero cost).
    _v2 = conv3x3_sigmoid(x1_nchw, w1, b1)
    # x2 = torch.randn(N, 8, H, W): i.i.d. standard normal, drawn inside the
    # same jit in NCHW (its flattening to [Cin, H*W] for the kernel is free).
    x2 = jax.random.normal(key_x2, (N, 8, H, W), jnp.float32)
    return conv3x3_sigmoid(x2, w2, b2)


def reference_conv_sigmoid(x, w, b):
    y = jax.lax.conv_general_dilated(
        x, w, window_strides=(1, 1), padding=((1, 1), (1, 1)),
        dimension_numbers=("NCHW", "OIHW", "NCHW"))
    return jax.nn.sigmoid(y + b.reshape(1, -1, 1, 1))


if __name__ == "__main__":
    key = jax.random.PRNGKey(0)
    k_x1, k_c1, k_c2, k_x2 = jax.random.split(key, 4)

    # Small shapes consistent with the module: N=1, Cin=3, spatial=16.
    N, H, W = 1, 16, 16
    x1 = jax.random.normal(k_x1, (N, 3, H, W), jnp.float32)
    params = (init_conv_params(k_c1, 3, 8), init_conv_params(k_c2, 8, 16))

    out = model_forward(x1, params, k_x2)
    out = jax.block_until_ready(out)
    assert out.shape == (N, 16, H, W), out.shape

    # Correctness check against the XLA conv reference, using the exact same x2
    # the forward drew (same key/shape/dtype -> identical values).  Tolerance
    # loosened for the bf16 MXU operands (f32 accumulation).
    x2 = jax.random.normal(k_x2, (N, 8, H, W), jnp.float32)
    ref = reference_conv_sigmoid(x2, params[1][0], params[1][1])
    np.testing.assert_allclose(np.asarray(out), np.asarray(ref),
                               rtol=2e-2, atol=2e-2)

    print("KERNEL_OK")
</pallas_src>

<mosaic_0001>
module attributes {stable_mosaic.version = 11 : i64} {
  func.func @_conv3x3_sigmoid_kernel(%arg0: i32, %arg1: memref<1x8x256xf32, #tpu.memory_space<vmem>>, %arg2: memref<16x72xbf16, #tpu.memory_space<vmem>>, %arg3: memref<16x1xf32, #tpu.memory_space<vmem>>, %arg4: memref<9x256xf32, #tpu.memory_space<vmem>>, %arg5: memref<1x16x256xf32, #tpu.memory_space<vmem>>, %arg6: memref<72x256xbf16, #tpu.memory_space<vmem>>) attributes {dimension_semantics = [#tpu.dimension_semantics<parallel>], iteration_bounds = array<i64: 1>, scalar_prefetch = 0 : i64, scratch_operands = 1 : i64, tpu.core_type = #tpu.core_type<tc>, window_params = [{transform_indices = @transform_0, window_bounds = array<i64: 1, 8, 256>}, {pipeline_mode = #tpu.pipeline_mode<synchronous>, transform_indices = @transform_1, window_bounds = array<i64: 16, 72>}, {pipeline_mode = #tpu.pipeline_mode<synchronous>, transform_indices = @transform_2, window_bounds = array<i64: 16, 1>}, {pipeline_mode = #tpu.pipeline_mode<synchronous>, transform_indices = @transform_3, window_bounds = array<i64: 9, 256>}, {transform_indices = @transform_4, window_bounds = array<i64: 1, 16, 256>}]} {
    %c0 = arith.constant 0 : index
    %c0_0 = arith.constant 0 : index
    %c0_1 = arith.constant 0 : index
    %0 = vector.load %arg1[%c0, %c0_0, %c0_1] : memref<1x8x256xf32, #tpu.memory_space<vmem>>, vector<1x8x256xf32>
    %1 = vector.shape_cast %0 : vector<1x8x256xf32> to vector<8x256xf32>
    %c17_i32 = arith.constant 17 : i32
    %2 = tpu.dynamic_rotate %1 by %c17_i32 dim 1 : vector<8x256xf32>, i32 -> vector<8x256xf32>
    %c0_2 = arith.constant 0 : index
    %c0_3 = arith.constant 0 : index
    %3 = vector.load %arg4[%c0_2, %c0_3] : memref<9x256xf32, #tpu.memory_space<vmem>>, vector<1x256xf32>
    %4 = vector.broadcast %3 : vector<1x256xf32> to vector<8x256xf32>
    %5 = arith.mulf %2, %4 : vector<8x256xf32>
    %6 = arith.truncf %5 : vector<8x256xf32> to vector<8x256xbf16>
    %c0_4 = arith.constant 0 : index
    %c0_5 = arith.constant 0 : index
    %7 = vector.load %arg6[%c0_4, %c0_5] : memref<72x256xbf16, #tpu.memory_space<vmem>>, vector<8x256xbf16>
    tpu.vector_store %arg6[%c0_4, %c0_5], %6 {strides = array<i32>} : memref<72x256xbf16, #tpu.memory_space<vmem>>, vector<8x256xbf16>,
    %c16_i32 = arith.constant 16 : i32
    %8 = tpu.dynamic_rotate %1 by %c16_i32 dim 1 : vector<8x256xf32>, i32 -> vector<8x256xf32>
    %c1 = arith.constant 1 : index
    %c0_6 = arith.constant 0 : index
    %9 = vector.load %arg4[%c1, %c0_6] : memref<9x256xf32, #tpu.memory_space<vmem>>, vector<1x256xf32>
    %10 = vector.broadcast %9 : vector<1x256xf32> to vector<8x256xf32>
    %11 = arith.mulf %8, %10 : vector<8x256xf32>
    %12 = arith.truncf %11 : vector<8x256xf32> to vector<8x256xbf16>
    %c8 = arith.constant 8 : index
    %c0_7 = arith.constant 0 : index
    %13 = vector.load %arg6[%c8, %c0_7] : memref<72x256xbf16, #tpu.memory_space<vmem>>, vector<8x256xbf16>
    tpu.vector_store %arg6[%c8, %c0_7], %12 {strides = array<i32>} : memref<72x256xbf16, #tpu.memory_space<vmem>>, vector<8x256xbf16>,
    %c15_i32 = arith.constant 15 : i32
    %14 = tpu.dynamic_rotate %1 by %c15_i32 dim 1 : vector<8x256xf32>, i32 -> vector<8x256xf32>
    %c2 = arith.constant 2 : index
    %c0_8 = arith.constant 0 : index
    %15 = vector.load %arg4[%c2, %c0_8] : memref<9x256xf32, #tpu.memory_space<vmem>>, vector<1x256xf32>
    %16 = vector.broadcast %15 : vector<1x256xf32> to vector<8x256xf32>
    %17 = arith.mulf %14, %16 : vector<8x256xf32>
    %18 = arith.truncf %17 : vector<8x256xf32> to vector<8x256xbf16>
    %c16 = arith.constant 16 : index
    %c0_9 = arith.constant 0 : index
    %19 = vector.load %arg6[%c16, %c0_9] : memref<72x256xbf16, #tpu.memory_space<vmem>>, vector<8x256xbf16>
    tpu.vector_store %arg6[%c16, %c0_9], %18 {strides = array<i32>} : memref<72x256xbf16, #tpu.memory_space<vmem>>, vector<8x256xbf16>,
    %c1_i32 = arith.constant 1 : i32
    %20 = tpu.dynamic_rotate %1 by %c1_i32 dim 1 : vector<8x256xf32>, i32 -> vector<8x256xf32>
    %c3 = arith.constant 3 : index
    %c0_10 = arith.constant 0 : index
    %21 = vector.load %arg4[%c3, %c0_10] : memref<9x256xf32, #tpu.memory_space<vmem>>, vector<1x256xf32>
    %22 = vector.broadcast %21 : vector<1x256xf32> to vector<8x256xf32>
    %23 = arith.mulf %20, %22 : vector<8x256xf32>
    %24 = arith.truncf %23 : vector<8x256xf32> to vector<8x256xbf16>
    %c24 = arith.constant 24 : index
    %c0_11 = arith.constant 0 : index
    %25 = vector.load %arg6[%c24, %c0_11] : memref<72x256xbf16, #tpu.memory_space<vmem>>, vector<8x256xbf16>
    tpu.vector_store %arg6[%c24, %c0_11], %24 {strides = array<i32>} : memref<72x256xbf16, #tpu.memory_space<vmem>>, vector<8x256xbf16>,
    %26 = arith.truncf %1 : vector<8x256xf32> to vector<8x256xbf16>
    %c32 = arith.constant 32 : index
    %c0_12 = arith.constant 0 : index
    %27 = vector.load %arg6[%c32, %c0_12] : memref<72x256xbf16, #tpu.memory_space<vmem>>, vector<8x256xbf16>
    tpu.vector_store %arg6[%c32, %c0_12], %26 {strides = array<i32>} : memref<72x256xbf16, #tpu.memory_space<vmem>>, vector<8x256xbf16>,
    %c255_i32 = arith.constant 255 : i32
    %28 = tpu.dynamic_rotate %1 by %c255_i32 dim 1 : vector<8x256xf32>, i32 -> vector<8x256xf32>
    %c5 = arith.constant 5 : index
    %c0_13 = arith.constant 0 : index
    %29 = vector.load %arg4[%c5, %c0_13] : memref<9x256xf32, #tpu.memory_space<vmem>>, vector<1x256xf32>
    %30 = vector.broadcast %29 : vector<1x256xf32> to vector<8x256xf32>
    %31 = arith.mulf %28, %30 : vector<8x256xf32>
    %32 = arith.truncf %31 : vector<8x256xf32> to vector<8x256xbf16>
    %c40 = arith.constant 40 : index
    %c0_14 = arith.constant 0 : index
    %33 = vector.load %arg6[%c40, %c0_14] : memref<72x256xbf16, #tpu.memory_space<vmem>>, vector<8x256xbf16>
    tpu.vector_store %arg6[%c40, %c0_14], %32 {strides = array<i32>} : memref<72x256xbf16, #tpu.memory_space<vmem>>, vector<8x256xbf16>,
    %c241_i32 = arith.constant 241 : i32
    %34 = tpu.dynamic_rotate %1 by %c241_i32 dim 1 : vector<8x256xf32>, i32 -> vector<8x256xf32>
    %c6 = arith.constant 6 : index
    %c0_15 = arith.constant 0 : index
    %35 = vector.load %arg4[%c6, %c0_15] : memref<9x256xf32, #tpu.memory_space<vmem>>, vector<1x256xf32>
    %36 = vector.broadcast %35 : vector<1x256xf32> to vector<8x256xf32>
    %37 = arith.mulf %34, %36 : vector<8x256xf32>
    %38 = arith.truncf %37 : vector<8x256xf32> to vector<8x256xbf16>
    %c48 = arith.constant 48 : index
    %c0_16 = arith.constant 0 : index
    %39 = vector.load %arg6[%c48, %c0_16] : memref<72x256xbf16, #tpu.memory_space<vmem>>, vector<8x256xbf16>
    tpu.vector_store %arg6[%c48, %c0_16], %38 {strides = array<i32>} : memref<72x256xbf16, #tpu.memory_space<vmem>>, vector<8x256xbf16>,
    %c240_i32 = arith.constant 240 : i32
    %40 = tpu.dynamic_rotate %1 by %c240_i32 dim 1 : vector<8x256xf32>, i32 -> vector<8x256xf32>
    %c7 = arith.constant 7 : index
    %c0_17 = arith.constant 0 : index
    %41 = vector.load %arg4[%c7, %c0_17] : memref<9x256xf32, #tpu.memory_space<vmem>>, vector<1x256xf32>
    %42 = vector.broadcast %41 : vector<1x256xf32> to vector<8x256xf32>
    %43 = arith.mulf %40, %42 : vector<8x256xf32>
    %44 = arith.truncf %43 : vector<8x256xf32> to vector<8x256xbf16>
    %c56 = arith.constant 56 : index
    %c0_18 = arith.constant 0 : index
    %45 = vector.load %arg6[%c56, %c0_18] : memref<72x256xbf16, #tpu.memory_space<vmem>>, vector<8x256xbf16>
    tpu.vector_store %arg6[%c56, %c0_18], %44 {strides = array<i32>} : memref<72x256xbf16, #tpu.memory_space<vmem>>, vector<8x256xbf16>,
    %c239_i32 = arith.constant 239 : i32
    %46 = tpu.dynamic_rotate %1 by %c239_i32 dim 1 : vector<8x256xf32>, i32 -> vector<8x256xf32>
    %c8_19 = arith.constant 8 : index
    %c0_20 = arith.constant 0 : index
    %47 = vector.load %arg4[%c8_19, %c0_20] : memref<9x256xf32, #tpu.memory_space<vmem>>, vector<1x256xf32>
    %48 = vector.broadcast %47 : vector<1x256xf32> to vector<8x256xf32>
    %49 = arith.mulf %46, %48 : vector<8x256xf32>
    %50 = arith.truncf %49 : vector<8x256xf32> to vector<8x256xbf16>
    %c64 = arith.constant 64 : index
    %c0_21 = arith.constant 0 : index
    %51 = vector.load %arg6[%c64, %c0_21] : memref<72x256xbf16, #tpu.memory_space<vmem>>, vector<8x256xbf16>
    tpu.vector_store %arg6[%c64, %c0_21], %50 {strides = array<i32>} : memref<72x256xbf16, #tpu.memory_space<vmem>>, vector<8x256xbf16>,
    %c0_22 = arith.constant 0 : index
    %c0_23 = arith.constant 0 : index
    %52 = vector.load %arg2[%c0_22, %c0_23] : memref<16x72xbf16, #tpu.memory_space<vmem>>, vector<16x72xbf16>
    %c0_24 = arith.constant 0 : index
    %c0_25 = arith.constant 0 : index
    %53 = vector.load %arg6[%c0_24, %c0_25] : memref<72x256xbf16, #tpu.memory_space<vmem>>, vector<72x256xbf16>
    %cst = arith.constant dense<0.000000e+00> : vector<16x256xf32>
    %54 = tpu.matmul %52, %53, %cst {dimension_numbers = #tpu.dot_dimension_numbers<[1], [0], [0], [1], [0, 0, 1, 1], [], []>} : vector<16x72xbf16>, vector<72x256xbf16>, vector<16x256xf32> -> vector<16x256xf32>
    %c0_26 = arith.constant 0 : index
    %c0_27 = arith.constant 0 : index
    %55 = vector.load %arg3[%c0_26, %c0_27] : memref<16x1xf32, #tpu.memory_space<vmem>>, vector<16x1xf32>
    %56 = vector.broadcast %55 : vector<16x1xf32> to vector<16x256xf32>
    %57 = arith.addf %54, %56 : vector<16x256xf32>
    %58 = arith.negf %57 : vector<16x256xf32>
    %59 = math.exp %58 : vector<16x256xf32>
    %cst_28 = arith.constant 1.000000e+00 : f32
    %60 = vector.broadcast %cst_28 : f32 to vector<16x256xf32>
    %61 = arith.addf %60, %59 : vector<16x256xf32>
    %62 = arith.divf %60, %61 : vector<16x256xf32>
    %c0_29 = arith.constant 0 : index
    %c0_30 = arith.constant 0 : index
    %c0_31 = arith.constant 0 : index
    %63 = vector.load %arg5[%c0_29, %c0_30, %c0_31] : memref<1x16x256xf32, #tpu.memory_space<vmem>>, vector<1x16x256xf32>
    %64 = vector.shape_cast %63 : vector<1x16x256xf32> to vector<16x256xf32>
    %65 = vector.shape_cast %62 : vector<16x256xf32> to vector<1x16x256xf32>
    tpu.vector_store %arg5[%c0_29, %c0_30, %c0_31], %65 {strides = array<i32>} : memref<1x16x256xf32, #tpu.memory_space<vmem>>, vector<1x16x256xf32>,
    return
  }
  func.func @transform_0(%arg0: i32) -> (i32, i32, i32) {
    %c0_i32 = arith.constant 0 : i32
    %c0_i32_0 = arith.constant 0 : i32
    %c0_i32_1 = arith.constant 0 : i32
    return %arg0, %c0_i32, %c0_i32_0 : i32, i32, i32
  }
  func.func @transform_1(%arg0: i32) -> (i32, i32) {
    %c0_i32 = arith.constant 0 : i32
    %c0_i32_0 = arith.constant 0 : i32
    %c0_i32_1 = arith.constant 0 : i32
    return %c0_i32, %c0_i32_0 : i32, i32
  }
  func.func @transform_2(%arg0: i32) -> (i32, i32) {
    %c0_i32 = arith.constant 0 : i32
    %c0_i32_0 = arith.constant 0 : i32
    %c0_i32_1 = arith.constant 0 : i32
    return %c0_i32, %c0_i32_0 : i32, i32
  }
  func.func @transform_3(%arg0: i32) -> (i32, i32) {
    %c0_i32 = arith.constant 0 : i32
    %c0_i32_0 = arith.constant 0 : i32
    %c0_i32_1 = arith.constant 0 : i32
    return %c0_i32, %c0_i32_0 : i32, i32
  }
  func.func @transform_4(%arg0: i32) -> (i32, i32, i32) {
    %c0_i32 = arith.constant 0 : i32
    %c0_i32_0 = arith.constant 0 : i32
    %c0_i32_1 = arith.constant 0 : i32
    return %arg0, %c0_i32, %c0_i32_0 : i32, i32, i32
  }
}

</mosaic_0001>

<llo_original>
// kernel: model_forward.1
$region0: #{model_forward.1}
  #allocation0 [shape = 'u32[]', space=smem, size = 0x4, offset = 0x4, fixed_abs, tag = 'smem constant byte address 0x4 - core index']
  #allocation1 [shape = 'u32[144,128]{1,0:T(1,128)}', space=vmem, size = 0x12000, scoped, tag = 'internal scratch']
  #allocation2 [shape = 'bf16[72,256]{1,0:T(8,128)(2,1)}', space=vmem, size = 0x9000, scoped, tag = 'scratch operand']
  %s0 = inlined_call_operand.vmem [shape: f32[1,8,256], index: 0, kind: input, shape index: {}]
  %s1 = inlined_call_operand.vmem [shape: bf16[16,72], index: 1, kind: input, shape index: {}]
  %s2 = inlined_call_operand.vmem [shape: f32[16,1], index: 2, kind: input, shape index: {}]
  %s3 = inlined_call_operand.vmem [shape: f32[9,256], index: 3, kind: input, shape index: {}]
  %s4 = inlined_call_operand.vmem [shape: f32[1,16,256], index: 4, kind: output, shape index: {}]
  %s5 = sld [smem:[#allocation0]]
  $region26: #{model_forward.1} parent=0
    _
  %s7 = ssub.s32 1, %s5
  %s8 = scalar_select 0, %s7, %s5
  // Predicated region
  $region2: #{model_forward.1} parent=0 // pred_check
    _
  $region3: #{model_forward.1} parent=0 // pred_check_branch
    %10 = sbr.rel (0) target = $region5
  $region4: #{model_forward.1} parent=0 // pred_region
    _
  $region5: #{model_forward.1} parent=0 // pred_fallthru
    _
  // Predicated region
  $region6: #{model_forward.1} parent=0 // pred_check
    _
  $region7: #{model_forward.1} parent=0 // pred_check_branch
    %12 = sbr.rel (0) target = $region9
  $region8: #{model_forward.1} parent=0 // pred_region
    _
  $region9: #{model_forward.1} parent=0 // pred_fallthru
    _
  // Predicated region
  $region10: #{model_forward.1} parent=0 // pred_check
    _
  $region11: #{model_forward.1} parent=0 // pred_check_branch
    %14 = sbr.rel (0) target = $region13
  $region12: #{model_forward.1} parent=0 // pred_region
    _
  $region13: #{model_forward.1} parent=0 // pred_fallthru
    _
  // Predicated region
  $region14: #{model_forward.1} parent=0 // pred_check
    _
  $region15: #{model_forward.1} parent=0 // pred_check_branch
    %16 = sbr.rel (0) target = $region17
  $region16: #{model_forward.1} parent=0 // pred_region
    _
  $region17: #{model_forward.1} parent=0 // pred_fallthru
    _
  %v18 = vld [vmem:[%s0] sm:$0xff]
  %v19 = vld [vmem:[%s0 + $0x8] sm:$0xff]
  %20 = vrot.lane.b32.xlu0 %v18, 17
  %v21 = vpop.permute.xlu0 %20
  %22 = vrot.lane.b32.xlu0 %v19, 17
  %v23 = vpop.permute.xlu0 %22
  %v24 = vlaneseq
  %v25 = vand.u32 %v24, 127
  %vm26 = vcmp.lt.s32.totalorder %v25, 17
  %v27 = vsel %vm26, %v21, %v23
  %v28 = vsel %vm26, %v23, %v21
  %v29 = vld [vmem:[%s3] ss:$8 sm:$0x3]
  %v31 = vlaneseq
  %v32 = vshrl.u32 %v31, 7
  %v33 = vsub.s32 0, %v32
  %v34 = vrot.slane %v29, %v33
  %v35 = vlaneseq
  %v36 = vshrl.u32 %v35, 7
  %v37 = vsub.s32 1, %v36
  %v38 = vrot.slane %v29, %v37
  %v41 = vmul.f32 %v28, %v34
  %v42 = vmul.f32 %v27, %v38
  %v43 = vpack.c.bf16 %v41, %v41
  %v44 = vpack.c.bf16 %v42, %v42
  %v47 = vunpack.c.l.b16 %v43
  %v48 = vunpack.c.l.b16 %v44
  %v49 = vpack.c.b16 %v48, %v47
  %51 = vst [vmem:[#allocation2] sm:$0xff] %v49
  %52 = vrot.lane.b32.xlu0 %v18, 16
  %v53 = vpop.permute.xlu0 %52
  %54 = vrot.lane.b32.xlu0 %v19, 16
  %v55 = vpop.permute.xlu0 %54
  %vm56 = vcmp.lt.s32.totalorder %v25, 16
  %v57 = vsel %vm56, %v53, %v55
  %v58 = vsel %vm56, %v55, %v53
  %s59 = scalar_lea.vmem %s3, 1
  %v60 = vld [vmem:[%s59] ss:$8 sm:$0x3]
  %v62 = vlaneseq
  %v63 = vshrl.u32 %v62, 7
  %v64 = vsub.s32 0, %v63
  %v65 = vrot.slane %v60, %v64
  %v66 = vlaneseq
  %v67 = vshrl.u32 %v66, 7
  %v68 = vsub.s32 1, %v67
  %v69 = vrot.slane %v60, %v68
  %v72 = vmul.f32 %v58, %v65
  %v73 = vmul.f32 %v57, %v69
  %v74 = vpack.c.bf16 %v72, %v72
  %v75 = vpack.c.bf16 %v73, %v73
  %v78 = vunpack.c.l.b16 %v74
  %v79 = vunpack.c.l.b16 %v75
  %v80 = vpack.c.b16 %v79, %v78
  %82 = vst [vmem:[#allocation2 + $0x8] sm:$0xff] %v80
  %83 = vrot.lane.b32.xlu0 %v18, 15
  %v84 = vpop.permute.xlu0 %83
  %85 = vrot.lane.b32.xlu0 %v19, 15
  %v86 = vpop.permute.xlu0 %85
  %vm87 = vcmp.lt.s32.totalorder %v25, 15
  %v88 = vsel %vm87, %v84, %v86
  %v89 = vsel %vm87, %v86, %v84
  %s90 = scalar_lea.vmem %s3, 2
  %v91 = vld [vmem:[%s90] ss:$8 sm:$0x3]
  %v93 = vlaneseq
  %v94 = vshrl.u32 %v93, 7
  %v95 = vsub.s32 0, %v94
  %v96 = vrot.slane %v91, %v95
  %v97 = vlaneseq
  %v98 = vshrl.u32 %v97, 7
  %v99 = vsub.s32 1, %v98
  %v100 = vrot.slane %v91, %v99
  %v103 = vmul.f32 %v89, %v96
  %v104 = vmul.f32 %v88, %v100
  %v105 = vpack.c.bf16 %v103, %v103
  %v106 = vpack.c.bf16 %v104, %v104
  %v109 = vunpack.c.l.b16 %v105
  %v110 = vunpack.c.l.b16 %v106
  %v111 = vpack.c.b16 %v110, %v109
  %113 = vst [vmem:[#allocation2 + $0x10] sm:$0xff] %v111
  %114 = vrot.lane.b32.xlu0 %v18, 1
  %v115 = vpop.permute.xlu0 %114
  %116 = vrot.lane.b32.xlu0 %v19, 1
  %v117 = vpop.permute.xlu0 %116
  %vm118 = vcmp.lt.s32.totalorder %v25, 1
  %v119 = vsel %vm118, %v115, %v117
  %v120 = vsel %vm118, %v117, %v115
  %s121 = scalar_lea.vmem %s3, 3
  %v122 = vld [vmem:[%s121] ss:$8 sm:$0x3]
  %v124 = vlaneseq
  %v125 = vshrl.u32 %v124, 7
  %v126 = vsub.s32 0, %v125
  %v127 = vrot.slane %v122, %v126
  %v128 = vlaneseq
  %v129 = vshrl.u32 %v128, 7
  %v130 = vsub.s32 1, %v129
  %v131 = vrot.slane %v122, %v130
  %v134 = vmul.f32 %v120, %v127
  %v135 = vmul.f32 %v119, %v131
  %v136 = vpack.c.bf16 %v134, %v134
  %v137 = vpack.c.bf16 %v135, %v135
  %v140 = vunpack.c.l.b16 %v136
  %v141 = vunpack.c.l.b16 %v137
  %v142 = vpack.c.b16 %v141, %v140
  %144 = vst [vmem:[#allocation2 + $0x18] sm:$0xff] %v142
  %v145 = vpack.c.bf16 %v18, %v18
  %v146 = vpack.c.bf16 %v19, %v19
  %v149 = vunpack.c.l.b16 %v145
  %v150 = vunpack.c.l.b16 %v146
  %v151 = vpack.c.b16 %v150, %v149
  %153 = vst [vmem:[#allocation2 + $0x20] sm:$0xff] %v151
  %154 = vrot.lane.b32.xlu0 %v18, 127
  %v155 = vpop.permute.xlu0 %154
  %156 = vrot.lane.b32.xlu0 %v19, 127
  %v157 = vpop.permute.xlu0 %156
  %vm158 = vcmp.lt.s32.totalorder %v25, 127
  %v159 = vsel %vm158, %v155, %v157
  %v160 = vsel %vm158, %v157, %v155
  %s161 = scalar_lea.vmem %s3, 5
  %v162 = vld [vmem:[%s161] ss:$8 sm:$0x3]
  %v164 = vlaneseq
  %v165 = vshrl.u32 %v164, 7
  %v166 = vsub.s32 0, %v165
  %v167 = vrot.slane %v162, %v166
  %v168 = vlaneseq
  %v169 = vshrl.u32 %v168, 7
  %v170 = vsub.s32 1, %v169
  %v171 = vrot.slane %v162, %v170
  %v174 = vmul.f32 %v159, %v167
  %v175 = vmul.f32 %v160, %v171
  %v176 = vpack.c.bf16 %v174, %v174
  %v177 = vpack.c.bf16 %v175, %v175
  %v180 = vunpack.c.l.b16 %v176
  %v181 = vunpack.c.l.b16 %v177
  %v182 = vpack.c.b16 %v181, %v180
  %184 = vst [vmem:[#allocation2 + $0x28] sm:$0xff] %v182
  %185 = vrot.lane.b32.xlu0 %v18, 113
  %v186 = vpop.permute.xlu0 %185
  %187 = vrot.lane.b32.xlu0 %v19, 113
  %v188 = vpop.permute.xlu0 %187
  %vm189 = vcmp.lt.s32.totalorder %v25, 113
  %v190 = vsel %vm189, %v186, %v188
  %v191 = vsel %vm189, %v188, %v186
  %s192 = scalar_lea.vmem %s3, 6
  %v193 = vld [vmem:[%s192] ss:$8 sm:$0x3]
  %v195 = vlaneseq
  %v196 = vshrl.u32 %v195, 7
  %v197 = vsub.s32 0, %v196
  %v198 = vrot.slane %v193, %v197
  %v199 = vlaneseq
  %v200 = vshrl.u32 %v199, 7
  %v201 = vsub.s32 1, %v200
  %v202 = vrot.slane %v193, %v201
  %v205 = vmul.f32 %v190, %v198
  %v206 = vmul.f32 %v191, %v202
  %v207 = vpack.c.bf16 %v205, %v205
  %v208 = vpack.c.bf16 %v206, %v206
  %v211 = vunpack.c.l.b16 %v207
  %v212 = vunpack.c.l.b16 %v208
  %v213 = vpack.c.b16 %v212, %v211
  %215 = vst [vmem:[#allocation2 + $0x30] sm:$0xff] %v213
  %216 = vrot.lane.b32.xlu0 %v18, 112
  %v217 = vpop.permute.xlu0 %216
  %218 = vrot.lane.b32.xlu0 %v19, 112
  %v219 = vpop.permute.xlu0 %218
  %vm220 = vcmp.lt.s32.totalorder %v25, 112
  %v221 = vsel %vm220, %v217, %v219
  %v222 = vsel %vm220, %v219, %v217
  %s223 = scalar_lea.vmem %s3, 7
  %v224 = vld [vmem:[%s223] ss:$8 sm:$0x3]
  %v226 = vlaneseq
  %v227 = vshrl.u32 %v226, 7
  %v228 = vsub.s32 0, %v227
  %v229 = vrot.slane %v224, %v228
  %v230 = vlaneseq
  %v231 = vshrl.u32 %v230, 7
  %v232 = vsub.s32 1, %v231
  %v233 = vrot.slane %v224, %v232
  %v236 = vmul.f32 %v221, %v229
  %v237 = vmul.f32 %v222, %v233
  %v238 = vpack.c.bf16 %v236, %v236
  %v239 = vpack.c.bf16 %v237, %v237
  %v242 = vunpack.c.l.b16 %v238
  %v243 = vunpack.c.l.b16 %v239
  %v244 = vpack.c.b16 %v243, %v242
  %246 = vst [vmem:[#allocation2 + $0x38] sm:$0xff] %v244
  %247 = vrot.lane.b32.xlu0 %v18, 111
  %v248 = vpop.permute.xlu0 %247
  %249 = vrot.lane.b32.xlu0 %v19, 111
  %v250 = vpop.permute.xlu0 %249
  %vm251 = vcmp.lt.s32.totalorder %v25, 111
  %v252 = vsel %vm251, %v248, %v250
  %v253 = vsel %vm251, %v250, %v248
  %s254 = scalar_lea.vmem %s3, 16
  %v255 = vld [vmem:[%s254] ss:$8 sm:$0x3]
  %v257 = vlaneseq
  %v258 = vshrl.u32 %v257, 7
  %v259 = vsub.s32 0, %v258
  %v260 = vrot.slane %v255, %v259
  %v261 = vlaneseq
  %v262 = vshrl.u32 %v261, 7
  %v263 = vsub.s32 1, %v262
  %v264 = vrot.slane %v255, %v263
  %v267 = vmul.f32 %v252, %v260
  %v268 = vmul.f32 %v253, %v264
  %v269 = vpack.c.bf16 %v267, %v267
  %v270 = vpack.c.bf16 %v268, %v268
  %v273 = vunpack.c.l.b16 %v269
  %v274 = vunpack.c.l.b16 %v270
  %v275 = vpack.c.b16 %v274, %v273
  %277 = vst [vmem:[#allocation2 + $0x40] sm:$0xff] %v275
  %v278 = vld [vmem:[%s1] sm:$0xf]
  %v279 = vld [vmem:[%s1 + $0x4] sm:$0xf]
  %v280 = vld [vmem:[#allocation2] sm:$0xff]
  %v281 = vld [vmem:[#allocation2 + $0x8] sm:$0xff]
  %v282 = vld [vmem:[#allocation2 + $0x10] sm:$0xff]
  %v283 = vld [vmem:[#allocation2 + $0x18] sm:$0xff]
  %v284 = vld [vmem:[#allocation2 + $0x20] sm:$0xff]
  %v285 = vld [vmem:[#allocation2 + $0x28] sm:$0xff]
  %v286 = vld [vmem:[#allocation2 + $0x30] sm:$0xff]
  %v287 = vld [vmem:[#allocation2 + $0x38] sm:$0xff]
  %v288 = vld [vmem:[#allocation2 + $0x40] sm:$0xff]
  %v289 = vld [vmem:[%s2] sm:$0xff]
  %v290 = vld [vmem:[%s2 + $0x8] sm:$0xff]
  %292 = vset.pattern.permute.xlu0 0
  %293 = vperm.xlu0 %292, %v289
  %v294 = vpop.permute.xlu0 %293
  %297 = vset.pattern.permute.xlu0 0
  %298 = vperm.xlu0 %297, %v290
  %v299 = vpop.permute.xlu0 %298
  %v303 = vunpack.c.l.b16 %v278
  %v304 = vunpack.c.l.b16 %v279
  %v305 = vpack.c.b16 %v304, %v303
  %v315 = vunpack.c.l.b16 %v280
  %v316 = vunpack.c.h.b16 %v280
  %v317 = vunpack.c.l.b16 %v281
  %v318 = vunpack.c.h.b16 %v281
  %v319 = vunpack.c.l.b16 %v282
  %v320 = vunpack.c.h.b16 %v282
  %v321 = vunpack.c.l.b16 %v283
  %v322 = vunpack.c.h.b16 %v283
  %v323 = vunpack.c.l.b16 %v284
  %v324 = vunpack.c.h.b16 %v284
  %v325 = vunpack.c.l.b16 %v285
  %v326 = vunpack.c.h.b16 %v285
  %v327 = vunpack.c.l.b16 %v286
  %v328 = vunpack.c.h.b16 %v286
  %v329 = vunpack.c.l.b16 %v287
  %v330 = vunpack.c.h.b16 %v287
  %v331 = vunpack.c.l.b16 %v288
  %v332 = vunpack.c.h.b16 %v288
  %v333 = vpack.c.b16 %v317, %v315
  %v334 = vpack.c.b16 %v318, %v316
  %v335 = vpack.c.b16 %v321, %v319
  %v336 = vpack.c.b16 %v322, %v320
  %v337 = vpack.c.b16 %v325, %v323
  %v338 = vpack.c.b16 %v326, %v324
  %v339 = vpack.c.b16 %v329, %v327
  %v340 = vpack.c.b16 %v330, %v328
  %v341 = vpack.c.b16 %v331, %v331
  %v342 = vpack.c.b16 %v332, %v332
  %vm351 = vcmask 588800
  %v353 = vsel %vm351, %v305, 0
  %vm355 = vcmask 1043456
  %v357 = vsel %vm355, %v341, 0
  %v360 = vsel %vm355, %v342, 0
  %362 = vmatprep.subr.bf16.mxu0 0
  %363 = vmatpush1.bf16.msra.mxu0 0
  %364 = vmatprep.subr.bf16.mxu0 0
  %365 = vmatpush1.bf16.msra.mxu0 0
  %366 = vmatprep.subr.bf16.mxu0 0
  %367 = vmatpush1.bf16.msra.mxu0 0
  %368 = vmatprep.subr.bf16.mxu0 %v360
  %369 = vmatpush1.bf16.msra.mxu0 %v357
  %370 = vmatprep.subr.bf16.mxu0 %v340
  %371 = vmatpush1.bf16.msra.mxu0 %v339
  %372 = vmatprep.subr.bf16.mxu0 %v338
  %373 = vmatpush1.bf16.msra.mxu0 %v337
  %374 = vmatprep.subr.bf16.mxu0 %v336
  %375 = vmatpush1.bf16.msra.mxu0 %v335
  %376 = vmatprep.subr.bf16.mxu0 %v334
  %377 = vmatpush1.bf16.msra.mxu0 %v333
  %378 = vmatprep.subr.bf16.mxu0 0
  %379 = vmatpush2.bf16.msra.mxu0 0
  %380 = vmatprep.subr.bf16.mxu0 0
  %381 = vmatpush2.bf16.msra.mxu0 0
  %382 = vmatprep.subr.bf16.mxu0 0
  %383 = vmatpush2.bf16.msra.mxu0 0
  %384 = vmatprep.subr.bf16.mxu0 0
  %385 = vmatpush2.bf16.msra.mxu0 0
  %386 = vmatprep.subr.bf16.mxu0 0
  %387 = vmatpush2.bf16.msra.mxu0 0
  %388 = vmatprep.subr.bf16.mxu0 0
  %389 = vmatpush2.bf16.msra.mxu0 0
  %390 = vmatprep.subr.bf16.mxu0 0
  %391 = vmatpush2.bf16.msra.mxu0 0
  %392 = vmatprep.subr.bf16.mxu0 0
  %393 = vmatpush2.bf16.msra.mxu0 0
  %394 = vmatprep.mubr.bf16.mxu0 0
  %395 = vmatmul.mubr.bf16.gmra.mxu0 %v353
  %v396 = vpop.f32.mrf.mxu0
  %v397 = vadd.f32 %v294, %v396
  %v398 = vpop.f32.mrf.mxu0
  %v399 = vadd.f32 %v294, %v398
  %v400 = vpop.f32.mrf.mxu0
  %v401 = vadd.f32 %v299, %v400
  %v402 = vpop.f32.mrf.mxu0
  %v403 = vadd.f32 %v299, %v402
  %404 = vdwg.mxu0
  %v405 = vxor.u32 %v397, 2147483648
  %v406 = vxor.u32 %v399, 2147483648
  %v407 = vxor.u32 %v401, 2147483648
  %v408 = vxor.u32 %v403, 2147483648
  %v409 = vmul.f32 %v405, 1.442695
  %v410 = vpow.pop %v409
  %v411 = vmul.f32 %v406, 1.442695
  %v412 = vpow.pop %v411
  %v413 = vmul.f32 %v407, 1.442695
  %v414 = vpow.pop %v413
  %v415 = vmul.f32 %v408, 1.442695
  %v416 = vpow.pop %v415
  %v417 = vadd.f32 %v410, 1.0
  %v418 = vadd.f32 %v412, 1.0
  %v419 = vadd.f32 %v414, 1.0
  %v420 = vadd.f32 %v416, 1.0
  %v421 = vrcp.pop %v417
  %v422 = vmul.f32 1.0, %v421
  %v423 = vrcp.pop %v418
  %v424 = vmul.f32 1.0, %v423
  %v425 = vrcp.pop %v419
  %v426 = vmul.f32 1.0, %v425
  %v427 = vrcp.pop %v420
  %v428 = vmul.f32 1.0, %v427
  %429 = vst [vmem:[%s4] sm:$0xff] %v422
  %430 = vst [vmem:[%s4 + $0x8] sm:$0xff] %v424
  %431 = vst [vmem:[%s4 + $0x10] sm:$0xff] %v426
  %432 = vst [vmem:[%s4 + $0x18] sm:$0xff] %v428
  // Predicated region
  $region18: #{model_forward.1} parent=0 // pred_check
    _
  $region19: #{model_forward.1} parent=0 // pred_check_branch
    %434 = sbr.rel (0) target = $region21
  $region20: #{model_forward.1} parent=0 // pred_region
    _
  $region21: #{model_forward.1} parent=0 // pred_fallthru
    _
  // Predicated region
  $region22: #{model_forward.1} parent=0 // pred_check
    _
  $region23: #{model_forward.1} parent=0 // pred_check_branch
    %436 = sbr.rel (0) target = $region25
  $region24: #{model_forward.1} parent=0 // pred_region
    _
  $region25: #{model_forward.1} parent=0 // pred_fallthru
    _

</llo_original>
